<compile_context>
chip_gen: v5e
topology: v5e:2x2
jax: 0.10.0
libtpu: 0.0.40
codegen_flags: <defaults>
</compile_context>

<pallas_src>
import math

import jax
import jax.numpy as jnp
from jax.experimental import pallas as pl
from jax.experimental.pallas import tpu as pltpu


def construct_H(group):
    """Deterministic normalized Hadamard matrix (same as PyTorch constructH)."""
    H = jnp.ones((1, 1), dtype=jnp.float32)
    for _ in range(int(math.log2(group))):
        H = jnp.concatenate(
            [jnp.concatenate([H, H], axis=1),
             jnp.concatenate([H, -H], axis=1)],
            axis=0,
        ) / math.sqrt(2.0)
    assert H.shape[0] == group
    return H


def _round_up(a, b):
    return (a + b - 1) // b * b


def _pick_feature_tile(dim, group):
    """Return (ft, fold): lane-tile width and row-fold factor.

    dim < 128  -> fold 128//dim rows into the lane axis (lane-dense, full MXU width).
    dim >= 128 -> chunk features into ft-wide tiles (<=512): weight is (dim/ft, ft, ft),
                  bounding both wasted MXU FLOPs and VMEM/HBM footprint.
    """
    if dim < 128:
        if 128 % dim == 0:
            return 128, 128 // dim
        return dim, 1
    for ft in (512, 384, 256, 128):
        if dim % ft == 0 and ft % group == 0:
            return ft, 1
    return dim, 1  # irregular dim: single full-width chunk (correct, not optimal)


def _build_chunked_weight(H_blocks, ft):
    """(nb, g, g) per-block weights -> (C, ft, ft) block-diagonal chunks."""
    nb, g, _ = H_blocks.shape
    bpc = ft // g
    C = nb // bpc
    Hr = H_blocks.reshape(C, bpc, g, g)
    eye = jnp.eye(bpc, dtype=H_blocks.dtype)
    # W[c, br*g + i, bc*g + j] = delta(br, bc) * Hr[c, br, i, j]
    W = eye[None, :, :, None, None] * Hr[:, :, None, :, :]  # (C, br, bc, g, g)
    W = W.transpose(0, 1, 3, 2, 4).reshape(C, ft, ft)
    return W


def _make_kernel(mxu_bf16):
    def kernel(x_ref, w_ref, o_ref):
        x = x_ref[...]
        w = w_ref[...]
        if mxu_bf16:
            # f32 accumulate keeps accuracy; Hadamard entries are +/- 2^(-k/2).
            x = x.astype(jnp.bfloat16)
            w = w.astype(jnp.bfloat16)
        o_ref[...] = jnp.dot(
            x, w, preferred_element_type=jnp.float32
        ).astype(o_ref.dtype)
    return kernel


def householder_inverse_multiply(x, H_inv, *, group, dim, tm=512, mxu_bf16=False):
    """Equivalent of HouseholderInverseMultiplier.forward.

    x:     any shape with total size divisible by `dim`
    H_inv: (dim // group, group, group) parameter (H.T repeated, as in the module)
    """
    nblk = dim // group
    assert H_inv.shape == (nblk, group, group)
    assert x.size % dim == 0, "total number of elements must be divisible by dim"

    ft, fold = _pick_feature_tile(dim, group)

    # Build the chunked block-diagonal weight in plain JAX (glue).
    H_blocks = H_inv if fold == 1 else jnp.tile(H_inv, (fold, 1, 1))
    W = _build_chunked_weight(H_blocks.astype(jnp.float32), ft)  # (C, ft, ft)
    C = W.shape[0]
    L = C * ft  # lane-folded row width == fold * dim

    x_shape = x.shape
    xf = x.reshape(-1, dim)
    N = xf.shape[0]

    # Row tiling in folded-row space; ragged N handled by zero padding.
    nf = pl.cdiv(N, fold)
    tm = min(tm, _round_up(max(nf, 1), 8))
    rows_pad = _round_up(nf, tm)
    n_pad = rows_pad * fold
    if n_pad != N:
        xf = jnp.pad(xf, ((0, n_pad - N), (0, 0)))
    x2 = xf.reshape(rows_pad, L)

    grid = (C, rows_pad // tm)  # row axis innermost -> weight chunk stays resident

    # VMEM budget: x + out double-buffered tiles + double-buffered weight chunk.
    est_vmem = (2 * 2 * tm * ft + 2 * ft * ft) * 4 + (4 << 20)
    vmem_limit = int(min(max(est_vmem, 32 << 20), 56 << 20))

    # Single-buffer the weight only when it is grid-invariant AND large enough
    # to matter for the v7x 64 MiB budget (never triggered for regular dims,
    # where the chunk is <= 1 MiB).
    if C == 1 and ft * ft * 4 >= (4 << 20):
        w_spec = pl.BlockSpec((None, ft, ft), lambda c, i: (c, 0, 0),
                              pipeline_mode=pl.Buffered(1))
    else:
        w_spec = pl.BlockSpec((None, ft, ft), lambda c, i: (c, 0, 0))

    cost = pl.CostEstimate(
        flops=2 * rows_pad * L * ft,
        transcendentals=0,
        bytes_accessed=(2 * rows_pad * L + C * ft * ft) * 4,
    )

    out = pl.pallas_call(
        _make_kernel(mxu_bf16),
        out_shape=jax.ShapeDtypeStruct((rows_pad, L), x.dtype),
        grid_spec=pltpu.PrefetchScalarGridSpec(
            num_scalar_prefetch=0,
            grid=grid,
            in_specs=[
                pl.BlockSpec((tm, ft), lambda c, i: (i, c)),  # row tile of x
                w_spec,                                       # (ft, ft) weight chunk
            ],
            out_specs=pl.BlockSpec((tm, ft), lambda c, i: (i, c)),
        ),
        compiler_params=pltpu.CompilerParams(
            dimension_semantics=("parallel", "parallel"),
            vmem_limit_bytes=vmem_limit,
        ),
        cost_estimate=cost,
    )(x2, W)

    out = out.reshape(rows_pad * fold, dim)[:N]
    return out.reshape(x_shape)


def _reference(x, H_inv, *, group, dim):
    xb = x.reshape(-1, dim).reshape(-1, dim // group, group)
    return jnp.einsum("nbg,bgh->nbh", xb, H_inv).reshape(x.shape)


if __name__ == "__main__":
    group, dim = 8, 32

    # Parameter init exactly as in __init__: H_inv = H.t().repeat(dim//group, 1, 1)
    H = construct_H(group)
    H_inv = jnp.tile(H.T[None, :, :], (dim // group, 1, 1))

    key = jax.random.PRNGKey(0)

    # Case 1: (batch=2, seq=8, hidden=dim=32)
    x = jax.random.normal(key, (2, 8, dim), dtype=jnp.float32)
    y = householder_inverse_multiply(x, H_inv, group=group, dim=dim)
    y = jax.block_until_ready(y)
    ref = _reference(x, H_inv, group=group, dim=dim)
    assert y.shape == x.shape and y.dtype == x.dtype
    assert jnp.allclose(y, ref, atol=1e-5, rtol=1e-5), "mismatch vs reference (case 1)"

    # Case 2: ragged row count (exercises wrapper padding path)
    x2 = jax.random.normal(jax.random.PRNGKey(1), (3, 5, dim), dtype=jnp.float32)
    y2 = householder_inverse_multiply(x2, H_inv, group=group, dim=dim)
    y2 = jax.block_until_ready(y2)
    ref2 = _reference(x2, H_inv, group=group, dim=dim)
    assert y2.shape == x2.shape and y2.dtype == x2.dtype
    assert jnp.allclose(y2, ref2, atol=1e-5, rtol=1e-5), "mismatch vs reference (case 2)"

    print("KERNEL_OK")
</pallas_src>

<mosaic_0001>
module attributes {stable_mosaic.version = 11 : i64} {
  func.func @kernel(%arg0: i32, %arg1: i32, %arg2: memref<8x128xf32, #tpu.memory_space<vmem>>, %arg3: memref<1x128x128xf32, #tpu.memory_space<vmem>>, %arg4: memref<8x128xf32, #tpu.memory_space<vmem>>) attributes {dimension_semantics = [#tpu.dimension_semantics<parallel>, #tpu.dimension_semantics<parallel>], iteration_bounds = array<i64: 1, 1>, scalar_prefetch = 0 : i64, scratch_operands = 0 : i64, tpu.core_type = #tpu.core_type<tc>, window_params = [{transform_indices = @transform_0, window_bounds = array<i64: 8, 128>}, {transform_indices = @transform_1, window_bounds = array<i64: 1, 128, 128>}, {transform_indices = @transform_2, window_bounds = array<i64: 8, 128>}]} {
    %c0 = arith.constant 0 : index
    %c0_0 = arith.constant 0 : index
    %0 = vector.load %arg2[%c0, %c0_0] : memref<8x128xf32, #tpu.memory_space<vmem>>, vector<8x128xf32>
    %c0_1 = arith.constant 0 : index
    %c0_2 = arith.constant 0 : index
    %c0_3 = arith.constant 0 : index
    %1 = vector.load %arg3[%c0_1, %c0_2, %c0_3] : memref<1x128x128xf32, #tpu.memory_space<vmem>>, vector<1x128x128xf32>
    %2 = vector.shape_cast %1 : vector<1x128x128xf32> to vector<128x128xf32>
    %cst = arith.constant dense<0.000000e+00> : vector<8x128xf32>
    %3 = tpu.matmul %0, %2, %cst {dimension_numbers = #tpu.dot_dimension_numbers<[1], [0], [0], [1], [0, 0, 1, 1], [], []>} : vector<8x128xf32>, vector<128x128xf32>, vector<8x128xf32> -> vector<8x128xf32>
    %c0_4 = arith.constant 0 : index
    %c0_5 = arith.constant 0 : index
    %4 = vector.load %arg4[%c0_4, %c0_5] : memref<8x128xf32, #tpu.memory_space<vmem>>, vector<8x128xf32>
    tpu.vector_store %arg4[%c0_4, %c0_5], %3 {strides = array<i32>} : memref<8x128xf32, #tpu.memory_space<vmem>>, vector<8x128xf32>,
    return
  }
  func.func @transform_0(%arg0: i32, %arg1: i32) -> (i32, i32) {
    %c0_i32 = arith.constant 0 : i32
    return %arg1, %arg0 : i32, i32
  }
  func.func @transform_1(%arg0: i32, %arg1: i32) -> (i32, i32, i32) {
    %c0_i32 = arith.constant 0 : i32
    %c0_i32_0 = arith.constant 0 : i32
    %c0_i32_1 = arith.constant 0 : i32
    return %arg0, %c0_i32, %c0_i32_0 : i32, i32, i32
  }
  func.func @transform_2(%arg0: i32, %arg1: i32) -> (i32, i32) {
    %c0_i32 = arith.constant 0 : i32
    return %arg1, %arg0 : i32, i32
  }
}

</mosaic_0001>

<llo_original>
// kernel: tpu_custom_call.1
$region0: #{tpu_custom_call.1}
  #allocation0 [shape = 'u32[]', space=smem, size = 0x4, offset = 0x4, fixed_abs, tag = 'smem constant byte address 0x4 - core index']
  #allocation1 [shape = 'u32[72,128]{1,0:T(1,128)}', space=vmem, size = 0x9000, scoped, tag = 'internal scratch']
  %s0 = inlined_call_operand.hbm [shape: f32[8,128], index: 0, kind: input, shape index: {}]
  %s1 = inlined_call_operand.hbm [shape: f32[1,128,128], index: 1, kind: input, shape index: {}]
  %s2 = inlined_call_operand.hbm [shape: f32[8,128], index: 2, kind: output, shape index: {}]
  %s3 = sld [smem:[#allocation0]]
  $region26: #{tpu_custom_call.1} parent=0
    _
  %s5 = ssub.s32 1, %s3
  %s6 = scalar_select 0, %s5, %s3
  $region1: #{tpu_custom_call.1} parent=0
    #allocation2 [shape = 'u8[4096]{0}', space=vmem, size = 0x1000, scoped, tag = 'input window, operand 0, single buffered']
    #allocation3 [shape = 's32[1]{0}', space=sflag, size = 0x4, scoped, tag = 'scoped memory for tpu_custom_call.1']
    #allocation4 [shape = 's32[1]{0}', space=sflag, size = 0x4, scoped, tag = 'scoped memory for tpu_custom_call.1']
    #allocation5 [shape = 'u8[65536]{0}', space=vmem, size = 0x10000, scoped, tag = 'input window, operand 1, single buffered']
    #allocation6 [shape = 's32[1]{0}', space=sflag, size = 0x4, scoped, tag = 'scoped memory for tpu_custom_call.1']
    #allocation7 [shape = 'u8[4096]{0}', space=vmem, size = 0x1000, scoped, tag = 'output window, operand 0, single buffered']
    %7 = vsyncpa [#allocation3], 0
    %8 = vsyncpa [#allocation6], 0
    %9 = vsyncpa [#allocation4], 0
    // Predicated region
    $region2: #{tpu_custom_call.1} parent=1 // pred_check
      _
    $region3: #{tpu_custom_call.1} parent=1 // pred_check_branch
      %11 = sbr.rel (0) target = $region5
    $region4: #{tpu_custom_call.1} parent=1 // pred_region
      %13 = vsyncadd [#allocation3], 0
      %s15 = sshll.u32 %s0, 4
      %s16 = int_to_ptr.hbm [resolvable:$true] %s15
      %s17 = sshll.u32 [#allocation2], 4
      %s18 = int_to_ptr.vmem [resolvable:$true] %s17
      %20 = dma.hbm_to_vmem [thread:$0]  %s16, 128, %s18, [#allocation3]
    $region5: #{tpu_custom_call.1} parent=1 // pred_fallthru
      _
    // Predicated region
    $region6: #{tpu_custom_call.1} parent=1 // pred_check
      _
    $region7: #{tpu_custom_call.1} parent=1 // pred_check_branch
      %22 = sbr.rel (0) target = $region9
    $region8: #{tpu_custom_call.1} parent=1 // pred_region
      %24 = vsyncadd [#allocation6], 0
      %s25 = sshll.u32 %s1, 4
      %s26 = int_to_ptr.hbm [resolvable:$true] %s25
      %s27 = sshll.u32 [#allocation5], 4
      %s28 = int_to_ptr.vmem [resolvable:$true] %s27
      %33 = dma.hbm_to_vmem [thread:$0]  %s26, 2048, %s28, [#allocation6], 128, 128, 8
    $region9: #{tpu_custom_call.1} parent=1 // pred_fallthru
      _
    // Predicated region
    $region10: #{tpu_custom_call.1} parent=1 // pred_check
      _
    $region11: #{tpu_custom_call.1} parent=1 // pred_check_branch
      %35 = sbr.rel (0) target = $region13
    $region12: #{tpu_custom_call.1} parent=1 // pred_region
      %37 = dma.done [#allocation3], 128
    $region13: #{tpu_custom_call.1} parent=1 // pred_fallthru
      _
    // Predicated region
    $region14: #{tpu_custom_call.1} parent=1 // pred_check
      _
    $region15: #{tpu_custom_call.1} parent=1 // pred_check_branch
      %39 = sbr.rel (0) target = $region17
    $region16: #{tpu_custom_call.1} parent=1 // pred_region
      %41 = dma.done [#allocation6], 2048
    $region17: #{tpu_custom_call.1} parent=1 // pred_fallthru
      _
    %v42 = vld [vmem:[#allocation2] sm:$0xff]
    %v43 = vld [vmem:[#allocation5] sm:$0xff]
    %v44 = vld [vmem:[#allocation5 + $0x8] sm:$0xff]
    %v45 = vld [vmem:[#allocation5 + $0x10] sm:$0xff]
    %v46 = vld [vmem:[#allocation5 + $0x18] sm:$0xff]
    %v47 = vld [vmem:[#allocation5 + $0x20] sm:$0xff]
    %v48 = vld [vmem:[#allocation5 + $0x28] sm:$0xff]
    %v49 = vld [vmem:[#allocation5 + $0x30] sm:$0xff]
    %v50 = vld [vmem:[#allocation5 + $0x38] sm:$0xff]
    %v51 = vld [vmem:[#allocation5 + $0x40] sm:$0xff]
    %v52 = vld [vmem:[#allocation5 + $0x48] sm:$0xff]
    %v53 = vld [vmem:[#allocation5 + $0x50] sm:$0xff]
    %v54 = vld [vmem:[#allocation5 + $0x58] sm:$0xff]
    %v55 = vld [vmem:[#allocation5 + $0x60] sm:$0xff]
    %v56 = vld [vmem:[#allocation5 + $0x68] sm:$0xff]
    %v57 = vld [vmem:[#allocation5 + $0x70] sm:$0xff]
    %v58 = vld [vmem:[#allocation5 + $0x78] sm:$0xff]
    %59 = vmatpush.msra.mxu0 %v58
    %60 = vmatpush.msra.mxu0 %v57
    %61 = vmatpush.msra.mxu0 %v56
    %62 = vmatpush.msra.mxu0 %v55
    %63 = vmatpush.msra.mxu0 %v54
    %64 = vmatpush.msra.mxu0 %v53
    %65 = vmatpush.msra.mxu0 %v52
    %66 = vmatpush.msra.mxu0 %v51
    %67 = vmatpush.msra.mxu0 %v50
    %68 = vmatpush.msra.mxu0 %v49
    %69 = vmatpush.msra.mxu0 %v48
    %70 = vmatpush.msra.mxu0 %v47
    %71 = vmatpush.msra.mxu0 %v46
    %72 = vmatpush.msra.mxu0 %v45
    %73 = vmatpush.msra.mxu0 %v44
    %74 = vmatpush.msra.mxu0 %v43
    %75 = vmatmul.f32.gmra.mxu0 %v42
    %v76 = vpop.f32.mrf.mxu0
    %v77 = vadd.f32 0.0, %v76
    %78 = vdwg.mxu0
    %79 = vst [vmem:[#allocation7] sm:$0xff] %v77
    // Predicated region
    $region18: #{tpu_custom_call.1} parent=1 // pred_check
      _
    $region19: #{tpu_custom_call.1} parent=1 // pred_check_branch
      %81 = sbr.rel (0) target = $region21
    $region20: #{tpu_custom_call.1} parent=1 // pred_region
      %83 = vsyncadd [#allocation4], 0
      %s85 = sshll.u32 [#allocation7], 4
      %s86 = int_to_ptr.vmem [resolvable:$true] %s85
      %s87 = sshll.u32 %s2, 4
      %s88 = int_to_ptr.hbm [resolvable:$true] %s87
      %90 = dma.vmem_to_hbm [thread:$0]  %s86, 128, %s88, [#allocation4]
    $region21: #{tpu_custom_call.1} parent=1 // pred_fallthru
      _
    // Predicated region
    $region22: #{tpu_custom_call.1} parent=1 // pred_check
      _
    $region23: #{tpu_custom_call.1} parent=1 // pred_check_branch
      %92 = sbr.rel (0) target = $region25
    $region24: #{tpu_custom_call.1} parent=1 // pred_region
      %94 = dma.done [#allocation4], 128
    $region25: #{tpu_custom_call.1} parent=1 // pred_fallthru
      _
    %95 = vsyncpa [#allocation3], 1
    %96 = vsyncpa [#allocation6], 1
    %97 = vsyncpa [#allocation4], 1

</llo_original>
